<compile_context>
chip_gen: v7x
topology: tpu7x:2x2x1
jax: 0.10.0
libtpu: 0.0.40
codegen_flags: <defaults>
</compile_context>

<pallas_src>
import jax
import jax.numpy as jnp
from jax import lax
from jax.experimental import pallas as pl
from jax.experimental.pallas import tpu as pltpu

EPS = 1e-5

# MXU operand dtype.  On v6e/v7x set to jnp.bfloat16 for ~4x MXU throughput and
# half the operand footprint (accumulation stays f32 via preferred_element_type).
# Kept f32 here so the 1e-4 self-check against the f32 reference holds exactly.
MM_DTYPE = jnp.float32


def _folded_bn_scale_bias(hs, gamma, beta, inv_count):
    """Training-mode BatchNorm folded to per-channel (scale, bias).

    hs: list of per-batch (C, L) f32 activations (stats span all of them).
    gamma, beta: (C, 1) f32 column vectors.  Returns (C, 1) scale and bias.
    """
    s = None
    sq = None
    for h in hs:
        hsum = jnp.sum(h, axis=1, keepdims=True)        # (C, 1)  lane reduce (XLU)
        hsq = jnp.sum(h * h, axis=1, keepdims=True)     # (C, 1)
        s = hsum if s is None else s + hsum
        sq = hsq if sq is None else sq + hsq
    mean = s * inv_count
    var = sq * inv_count - mean * mean                  # biased var (PyTorch train mode)
    scale = gamma * lax.rsqrt(var + EPS)                # rsqrt -> EUP slot (free-ish)
    bias = beta - mean * scale
    return scale, bias


def bottleneck_kernel(x_ref, w1_ref, w2f_ref, w3_ref,
                      g1_ref, b1_ref, g2_ref, b2_ref, g3_ref, b3_ref,
                      o_ref):
    N, C, L = x_ref.shape
    W = w1_ref.shape[0]                       # bottleneck width
    inv_nl = 1.0 / float(N * L)

    w1 = w1_ref[...].astype(MM_DTYPE)         # (W, C)
    w2f = w2f_ref[...].astype(MM_DTYPE)       # (W, 3W)  -- three taps fused along K
    w3 = w3_ref[...].astype(MM_DTYPE)         # (Co, W)

    # Batch is a small static Python loop: the whole batch must be resident
    # anyway because the training-mode BN stats span all of (N, L).
    xs = [x_ref[n] for n in range(N)]         # each (C, L), L on lanes

    # ---- conv1: 1x1 conv == (W, C) @ (C, L) single MXU matmul per batch ----
    h1 = [jnp.dot(w1, xn.astype(MM_DTYPE), preferred_element_type=jnp.float32)
          for xn in xs]                                            # (W, L) f32
    sc1, bi1 = _folded_bn_scale_bias(h1, g1_ref[...], b1_ref[...], inv_nl)
    h1 = [jnp.maximum(h * sc1 + bi1, 0.0) for h in h1]

    # ---- conv2: kernel_size=3, padding=1 -> ONE matmul (W, 3W) @ (3W, L) ----
    zcol = jnp.zeros((W, 1), jnp.float32)

    def fused_taps(h):                                             # h: (W, L)
        prev = jnp.concatenate([zcol, h[:, :L - 1]], axis=1)       # h[:, l-1], 0 at l=0
        nxt = jnp.concatenate([h[:, 1:], zcol], axis=1)            # h[:, l+1], 0 at l=L-1
        return jnp.concatenate([prev, h, nxt], axis=0)             # (3W, L), tap-major rows

    h2 = [jnp.dot(w2f, fused_taps(h).astype(MM_DTYPE),
                  preferred_element_type=jnp.float32)
          for h in h1]                                             # (W, L) f32
    sc2, bi2 = _folded_bn_scale_bias(h2, g2_ref[...], b2_ref[...], inv_nl)
    h2 = [jnp.maximum(h * sc2 + bi2, 0.0) for h in h2]

    # ---- conv3: 1x1 conv == (Co, W) @ (W, L) ----
    h3 = [jnp.dot(w3, h.astype(MM_DTYPE), preferred_element_type=jnp.float32)
          for h in h2]                                             # (Co, L) f32
    sc3, bi3 = _folded_bn_scale_bias(h3, g3_ref[...], b3_ref[...], inv_nl)

    # ---- BN3 + identity residual + ReLU; store NCL (L stays on lanes) ----
    for n in range(N):
        y = h3[n] * sc3 + bi3 + xs[n].astype(jnp.float32)
        o_ref[n] = jnp.maximum(y, 0.0).astype(o_ref.dtype)


def bottleneck_pallas(x_ncl, params):
    """x_ncl: (N, C, L) float32 (PyTorch Conv1d layout). Returns (N, C, L)."""
    N, C, L = x_ncl.shape
    width = params['w1'].shape[0]
    out_ch = params['w3'].shape[0]
    assert out_ch == C, "identity residual requires inplanes == planes * expansion"

    # Weight repacking (tiny, one-off, outside the kernel): fuse the three k=3
    # taps along the contraction axis so conv2 is a single matmul.
    # torch w2 (O, I, K=3) -> (O, K, I) -> (O, 3I); column index = k*I + i,
    # matching the [prev | center | next] row ordering built in-kernel.
    w2f = jnp.transpose(params['w2'], (0, 2, 1)).reshape(width, 3 * width)
    col = lambda v: v.reshape(-1, 1).astype(jnp.float32)   # per-channel column vecs

    args = (x_ncl, params['w1'], w2f, params['w3'],
            col(params['g1']), col(params['b1']),
            col(params['g2']), col(params['b2']),
            col(params['g3']), col(params['b3']))

    # Grid-less fused form is only valid while the whole activation set fits
    # the per-generation VMEM budget (BN training stats span all of (N, L)).
    act_bytes = 4 * N * L * (2 * C + 5 * width + out_ch)
    assert act_bytes < 24 * 1024 * 1024, (
        "TODO(synk): tile over (N, L) with a two-pass (partial-stats, "
        "normalize) BatchNorm for non-toy sizes")

    vmem = pl.BlockSpec(memory_space=pltpu.MemorySpace.VMEM)
    return pl.pallas_call(
        bottleneck_kernel,
        out_shape=jax.ShapeDtypeStruct((N, C, L), x_ncl.dtype),
        in_specs=[vmem] * len(args),
        out_specs=vmem,
        compiler_params=pltpu.CompilerParams(vmem_limit_bytes=32 * 1024 * 1024),
    )(*args)


# ---------------- pure-JAX reference (NCL layout, matches PyTorch) ----------------
def _bn_train_ncl(y, gamma, beta):
    mean = jnp.mean(y, axis=(0, 2), keepdims=True)
    var = jnp.mean((y - mean) ** 2, axis=(0, 2), keepdims=True)
    return (y - mean) * lax.rsqrt(var + EPS) * gamma[None, :, None] + beta[None, :, None]


def bottleneck_ref(x, p):
    dn = ('NCH', 'OIH', 'NCH')
    y = lax.conv_general_dilated(x, p['w1'][:, :, None], (1,), 'VALID',
                                 dimension_numbers=dn)
    y = jnp.maximum(_bn_train_ncl(y, p['g1'], p['b1']), 0.0)
    y = lax.conv_general_dilated(y, p['w2'], (1,), [(1, 1)], dimension_numbers=dn)
    y = jnp.maximum(_bn_train_ncl(y, p['g2'], p['b2']), 0.0)
    y = lax.conv_general_dilated(y, p['w3'][:, :, None], (1,), 'VALID',
                                 dimension_numbers=dn)
    y = _bn_train_ncl(y, p['g3'], p['b3'])
    return jnp.maximum(y + x, 0.0)


if __name__ == "__main__":
    # Bottleneck(inplanes=32, planes=8): width = 8, out channels = 8*4 = 32 == inplanes.
    inplanes, planes = 32, 8
    width = planes                       # base_width=64, groups=1
    out_ch = planes * 4                  # expansion = 4 -> identity residual valid
    N, L = 2, 16

    key = jax.random.PRNGKey(0)
    k = jax.random.split(key, 10)
    x = jax.random.normal(k[0], (N, inplanes, L), dtype=jnp.float32)

    params = {
        # torch Conv1d weight layouts: (out, in) for 1x1, (out, in, k) for k=3.
        'w1': 0.1 * jax.random.normal(k[1], (width, inplanes), jnp.float32),
        'g1': 1.0 + 0.1 * jax.random.normal(k[4], (width,), jnp.float32),
        'b1': 0.1 * jax.random.normal(k[5], (width,), jnp.float32),
        'w2': 0.1 * jax.random.normal(k[2], (width, width, 3), jnp.float32),
        'g2': 1.0 + 0.1 * jax.random.normal(k[6], (width,), jnp.float32),
        'b2': 0.1 * jax.random.normal(k[7], (width,), jnp.float32),
        'w3': 0.1 * jax.random.normal(k[3], (out_ch, width), jnp.float32),
        'g3': 1.0 + 0.1 * jax.random.normal(k[8], (out_ch,), jnp.float32),
        'b3': 0.1 * jax.random.normal(k[9], (out_ch,), jnp.float32),
    }

    out = jax.block_until_ready(bottleneck_pallas(x, params))
    ref = jax.block_until_ready(bottleneck_ref(x, params))

    assert out.shape == x.shape and out.dtype == x.dtype
    max_err = float(jnp.max(jnp.abs(out - ref)))
    assert max_err < 1e-4, f"mismatch vs reference: {max_err}"
    print("KERNEL_OK")
</pallas_src>

<mosaic_0001>
module attributes {stable_mosaic.version = 11 : i64} {
  func.func @bottleneck_kernel(%arg0: memref<2x32x16xf32, #tpu.memory_space<vmem>>, %arg1: memref<8x32xf32, #tpu.memory_space<vmem>>, %arg2: memref<8x24xf32, #tpu.memory_space<vmem>>, %arg3: memref<32x8xf32, #tpu.memory_space<vmem>>, %arg4: memref<8x1xf32, #tpu.memory_space<vmem>>, %arg5: memref<8x1xf32, #tpu.memory_space<vmem>>, %arg6: memref<8x1xf32, #tpu.memory_space<vmem>>, %arg7: memref<8x1xf32, #tpu.memory_space<vmem>>, %arg8: memref<32x1xf32, #tpu.memory_space<vmem>>, %arg9: memref<32x1xf32, #tpu.memory_space<vmem>>, %arg10: memref<2x32x16xf32, #tpu.memory_space<vmem>>) attributes {dimension_semantics = [], scalar_prefetch = 0 : i64, scratch_operands = 0 : i64, tpu.core_type = #tpu.core_type<tc>} {
    %c0 = arith.constant 0 : index
    %c0_0 = arith.constant 0 : index
    %0 = vector.load %arg1[%c0, %c0_0] : memref<8x32xf32, #tpu.memory_space<vmem>>, vector<8x32xf32>
    %c0_1 = arith.constant 0 : index
    %c0_2 = arith.constant 0 : index
    %1 = vector.load %arg2[%c0_1, %c0_2] : memref<8x24xf32, #tpu.memory_space<vmem>>, vector<8x24xf32>
    %c0_3 = arith.constant 0 : index
    %c0_4 = arith.constant 0 : index
    %2 = vector.load %arg3[%c0_3, %c0_4] : memref<32x8xf32, #tpu.memory_space<vmem>>, vector<32x8xf32>
    %c0_5 = arith.constant 0 : index
    %c0_6 = arith.constant 0 : index
    %c0_7 = arith.constant 0 : index
    %3 = vector.load %arg0[%c0_5, %c0_6, %c0_7] : memref<2x32x16xf32, #tpu.memory_space<vmem>>, vector<1x32x16xf32>
    %4 = vector.shape_cast %3 : vector<1x32x16xf32> to vector<32x16xf32>
    %c1 = arith.constant 1 : index
    %c0_8 = arith.constant 0 : index
    %c0_9 = arith.constant 0 : index
    %5 = vector.load %arg0[%c1, %c0_8, %c0_9] : memref<2x32x16xf32, #tpu.memory_space<vmem>>, vector<1x32x16xf32>
    %6 = vector.shape_cast %5 : vector<1x32x16xf32> to vector<32x16xf32>
    %cst = arith.constant dense<0.000000e+00> : vector<8x16xf32>
    %7 = tpu.matmul %0, %4, %cst {dimension_numbers = #tpu.dot_dimension_numbers<[1], [0], [0], [1], [0, 0, 1, 1], [], []>} : vector<8x32xf32>, vector<32x16xf32>, vector<8x16xf32> -> vector<8x16xf32>
    %cst_10 = arith.constant dense<0.000000e+00> : vector<8x16xf32>
    %8 = tpu.matmul %0, %6, %cst_10 {dimension_numbers = #tpu.dot_dimension_numbers<[1], [0], [0], [1], [0, 0, 1, 1], [], []>} : vector<8x32xf32>, vector<32x16xf32>, vector<8x16xf32> -> vector<8x16xf32>
    %c0_11 = arith.constant 0 : index
    %c0_12 = arith.constant 0 : index
    %9 = vector.load %arg4[%c0_11, %c0_12] : memref<8x1xf32, #tpu.memory_space<vmem>>, vector<8x1xf32>
    %c0_13 = arith.constant 0 : index
    %c0_14 = arith.constant 0 : index
    %10 = vector.load %arg5[%c0_13, %c0_14] : memref<8x1xf32, #tpu.memory_space<vmem>>, vector<8x1xf32>
    %cst_15 = arith.constant dense<0.000000e+00> : vector<8xf32>
    %11 = vector.multi_reduction <add>, %7, %cst_15 [1] : vector<8x16xf32> to vector<8xf32>
    %12 = vector.shape_cast %11 : vector<8xf32> to vector<8x1xf32>
    %13 = arith.mulf %7, %7 : vector<8x16xf32>
    %cst_16 = arith.constant dense<0.000000e+00> : vector<8xf32>
    %14 = vector.multi_reduction <add>, %13, %cst_16 [1] : vector<8x16xf32> to vector<8xf32>
    %15 = vector.shape_cast %14 : vector<8xf32> to vector<8x1xf32>
    %cst_17 = arith.constant dense<0.000000e+00> : vector<8xf32>
    %16 = vector.multi_reduction <add>, %8, %cst_17 [1] : vector<8x16xf32> to vector<8xf32>
    %17 = vector.shape_cast %16 : vector<8xf32> to vector<8x1xf32>
    %18 = arith.mulf %8, %8 : vector<8x16xf32>
    %cst_18 = arith.constant dense<0.000000e+00> : vector<8xf32>
    %19 = vector.multi_reduction <add>, %18, %cst_18 [1] : vector<8x16xf32> to vector<8xf32>
    %20 = vector.shape_cast %19 : vector<8xf32> to vector<8x1xf32>
    %21 = arith.addf %12, %17 : vector<8x1xf32>
    %22 = arith.addf %15, %20 : vector<8x1xf32>
    %cst_19 = arith.constant 3.125000e-02 : f32
    %23 = vector.broadcast %cst_19 : f32 to vector<8x1xf32>
    %24 = arith.mulf %21, %23 : vector<8x1xf32>
    %cst_20 = arith.constant 3.125000e-02 : f32
    %25 = vector.broadcast %cst_20 : f32 to vector<8x1xf32>
    %26 = arith.mulf %22, %25 : vector<8x1xf32>
    %27 = arith.mulf %24, %24 : vector<8x1xf32>
    %28 = arith.subf %26, %27 : vector<8x1xf32>
    %cst_21 = arith.constant 9.99999974E-6 : f32
    %29 = vector.broadcast %cst_21 : f32 to vector<8x1xf32>
    %30 = arith.addf %28, %29 : vector<8x1xf32>
    %31 = math.rsqrt %30 : vector<8x1xf32>
    %32 = arith.mulf %9, %31 : vector<8x1xf32>
    %33 = arith.mulf %24, %32 : vector<8x1xf32>
    %34 = arith.subf %10, %33 : vector<8x1xf32>
    %35 = vector.broadcast %32 : vector<8x1xf32> to vector<8x16xf32>
    %36 = arith.mulf %7, %35 : vector<8x16xf32>
    %37 = vector.broadcast %34 : vector<8x1xf32> to vector<8x16xf32>
    %38 = arith.addf %36, %37 : vector<8x16xf32>
    %cst_22 = arith.constant 0.000000e+00 : f32
    %39 = vector.broadcast %cst_22 : f32 to vector<8x16xf32>
    %40 = arith.maximumf %38, %39 : vector<8x16xf32>
    %41 = vector.broadcast %32 : vector<8x1xf32> to vector<8x16xf32>
    %42 = arith.mulf %8, %41 : vector<8x16xf32>
    %43 = vector.broadcast %34 : vector<8x1xf32> to vector<8x16xf32>
    %44 = arith.addf %42, %43 : vector<8x16xf32>
    %cst_23 = arith.constant 0.000000e+00 : f32
    %45 = vector.broadcast %cst_23 : f32 to vector<8x16xf32>
    %46 = arith.maximumf %44, %45 : vector<8x16xf32>
    %cst_24 = arith.constant 0.000000e+00 : f32
    %47 = vector.broadcast %cst_24 : f32 to vector<8x1xf32>
    %48 = vector.extract_strided_slice %40 {offsets = [0, 0], sizes = [8, 15], strides = [1, 1]} : vector<8x16xf32> to vector<8x15xf32>
    %49 = tpu.concatenate %47, %48 in 1 : vector<8x1xf32>, vector<8x15xf32> -> vector<8x16xf32>
    %50 = vector.extract_strided_slice %40 {offsets = [0, 1], sizes = [8, 15], strides = [1, 1]} : vector<8x16xf32> to vector<8x15xf32>
    %51 = tpu.concatenate %50, %47 in 1 : vector<8x15xf32>, vector<8x1xf32> -> vector<8x16xf32>
    %52 = tpu.concatenate %49, %40, %51 in 0 : vector<8x16xf32>, vector<8x16xf32>, vector<8x16xf32> -> vector<24x16xf32>
    %cst_25 = arith.constant dense<0.000000e+00> : vector<8x16xf32>
    %53 = tpu.matmul %1, %52, %cst_25 {dimension_numbers = #tpu.dot_dimension_numbers<[1], [0], [0], [1], [0, 0, 1, 1], [], []>} : vector<8x24xf32>, vector<24x16xf32>, vector<8x16xf32> -> vector<8x16xf32>
    %54 = vector.extract_strided_slice %46 {offsets = [0, 0], sizes = [8, 15], strides = [1, 1]} : vector<8x16xf32> to vector<8x15xf32>
    %55 = tpu.concatenate %47, %54 in 1 : vector<8x1xf32>, vector<8x15xf32> -> vector<8x16xf32>
    %56 = vector.extract_strided_slice %46 {offsets = [0, 1], sizes = [8, 15], strides = [1, 1]} : vector<8x16xf32> to vector<8x15xf32>
    %57 = tpu.concatenate %56, %47 in 1 : vector<8x15xf32>, vector<8x1xf32> -> vector<8x16xf32>
    %58 = tpu.concatenate %55, %46, %57 in 0 : vector<8x16xf32>, vector<8x16xf32>, vector<8x16xf32> -> vector<24x16xf32>
    %cst_26 = arith.constant dense<0.000000e+00> : vector<8x16xf32>
    %59 = tpu.matmul %1, %58, %cst_26 {dimension_numbers = #tpu.dot_dimension_numbers<[1], [0], [0], [1], [0, 0, 1, 1], [], []>} : vector<8x24xf32>, vector<24x16xf32>, vector<8x16xf32> -> vector<8x16xf32>
    %c0_27 = arith.constant 0 : index
    %c0_28 = arith.constant 0 : index
    %60 = vector.load %arg6[%c0_27, %c0_28] : memref<8x1xf32, #tpu.memory_space<vmem>>, vector<8x1xf32>
    %c0_29 = arith.constant 0 : index
    %c0_30 = arith.constant 0 : index
    %61 = vector.load %arg7[%c0_29, %c0_30] : memref<8x1xf32, #tpu.memory_space<vmem>>, vector<8x1xf32>
    %cst_31 = arith.constant dense<0.000000e+00> : vector<8xf32>
    %62 = vector.multi_reduction <add>, %53, %cst_31 [1] : vector<8x16xf32> to vector<8xf32>
    %63 = vector.shape_cast %62 : vector<8xf32> to vector<8x1xf32>
    %64 = arith.mulf %53, %53 : vector<8x16xf32>
    %cst_32 = arith.constant dense<0.000000e+00> : vector<8xf32>
    %65 = vector.multi_reduction <add>, %64, %cst_32 [1] : vector<8x16xf32> to vector<8xf32>
    %66 = vector.shape_cast %65 : vector<8xf32> to vector<8x1xf32>
    %cst_33 = arith.constant dense<0.000000e+00> : vector<8xf32>
    %67 = vector.multi_reduction <add>, %59, %cst_33 [1] : vector<8x16xf32> to vector<8xf32>
    %68 = vector.shape_cast %67 : vector<8xf32> to vector<8x1xf32>
    %69 = arith.mulf %59, %59 : vector<8x16xf32>
    %cst_34 = arith.constant dense<0.000000e+00> : vector<8xf32>
    %70 = vector.multi_reduction <add>, %69, %cst_34 [1] : vector<8x16xf32> to vector<8xf32>
    %71 = vector.shape_cast %70 : vector<8xf32> to vector<8x1xf32>
    %72 = arith.addf %63, %68 : vector<8x1xf32>
    %73 = arith.addf %66, %71 : vector<8x1xf32>
    %cst_35 = arith.constant 3.125000e-02 : f32
    %74 = vector.broadcast %cst_35 : f32 to vector<8x1xf32>
    %75 = arith.mulf %72, %74 : vector<8x1xf32>
    %cst_36 = arith.constant 3.125000e-02 : f32
    %76 = vector.broadcast %cst_36 : f32 to vector<8x1xf32>
    %77 = arith.mulf %73, %76 : vector<8x1xf32>
    %78 = arith.mulf %75, %75 : vector<8x1xf32>
    %79 = arith.subf %77, %78 : vector<8x1xf32>
    %cst_37 = arith.constant 9.99999974E-6 : f32
    %80 = vector.broadcast %cst_37 : f32 to vector<8x1xf32>
    %81 = arith.addf %79, %80 : vector<8x1xf32>
    %82 = math.rsqrt %81 : vector<8x1xf32>
    %83 = arith.mulf %60, %82 : vector<8x1xf32>
    %84 = arith.mulf %75, %83 : vector<8x1xf32>
    %85 = arith.subf %61, %84 : vector<8x1xf32>
    %86 = vector.broadcast %83 : vector<8x1xf32> to vector<8x16xf32>
    %87 = arith.mulf %53, %86 : vector<8x16xf32>
    %88 = vector.broadcast %85 : vector<8x1xf32> to vector<8x16xf32>
    %89 = arith.addf %87, %88 : vector<8x16xf32>
    %cst_38 = arith.constant 0.000000e+00 : f32
    %90 = vector.broadcast %cst_38 : f32 to vector<8x16xf32>
    %91 = arith.maximumf %89, %90 : vector<8x16xf32>
    %92 = vector.broadcast %83 : vector<8x1xf32> to vector<8x16xf32>
    %93 = arith.mulf %59, %92 : vector<8x16xf32>
    %94 = vector.broadcast %85 : vector<8x1xf32> to vector<8x16xf32>
    %95 = arith.addf %93, %94 : vector<8x16xf32>
    %cst_39 = arith.constant 0.000000e+00 : f32
    %96 = vector.broadcast %cst_39 : f32 to vector<8x16xf32>
    %97 = arith.maximumf %95, %96 : vector<8x16xf32>
    %cst_40 = arith.constant dense<0.000000e+00> : vector<32x16xf32>
    %98 = tpu.matmul %2, %91, %cst_40 {dimension_numbers = #tpu.dot_dimension_numbers<[1], [0], [0], [1], [0, 0, 1, 1], [], []>} : vector<32x8xf32>, vector<8x16xf32>, vector<32x16xf32> -> vector<32x16xf32>
    %cst_41 = arith.constant dense<0.000000e+00> : vector<32x16xf32>
    %99 = tpu.matmul %2, %97, %cst_41 {dimension_numbers = #tpu.dot_dimension_numbers<[1], [0], [0], [1], [0, 0, 1, 1], [], []>} : vector<32x8xf32>, vector<8x16xf32>, vector<32x16xf32> -> vector<32x16xf32>
    %c0_42 = arith.constant 0 : index
    %c0_43 = arith.constant 0 : index
    %100 = vector.load %arg8[%c0_42, %c0_43] : memref<32x1xf32, #tpu.memory_space<vmem>>, vector<32x1xf32>
    %c0_44 = arith.constant 0 : index
    %c0_45 = arith.constant 0 : index
    %101 = vector.load %arg9[%c0_44, %c0_45] : memref<32x1xf32, #tpu.memory_space<vmem>>, vector<32x1xf32>
    %cst_46 = arith.constant dense<0.000000e+00> : vector<32xf32>
    %102 = vector.multi_reduction <add>, %98, %cst_46 [1] : vector<32x16xf32> to vector<32xf32>
    %103 = vector.shape_cast %102 : vector<32xf32> to vector<32x1xf32>
    %104 = arith.mulf %98, %98 : vector<32x16xf32>
    %cst_47 = arith.constant dense<0.000000e+00> : vector<32xf32>
    %105 = vector.multi_reduction <add>, %104, %cst_47 [1] : vector<32x16xf32> to vector<32xf32>
    %106 = vector.shape_cast %105 : vector<32xf32> to vector<32x1xf32>
    %cst_48 = arith.constant dense<0.000000e+00> : vector<32xf32>
    %107 = vector.multi_reduction <add>, %99, %cst_48 [1] : vector<32x16xf32> to vector<32xf32>
    %108 = vector.shape_cast %107 : vector<32xf32> to vector<32x1xf32>
    %109 = arith.mulf %99, %99 : vector<32x16xf32>
    %cst_49 = arith.constant dense<0.000000e+00> : vector<32xf32>
    %110 = vector.multi_reduction <add>, %109, %cst_49 [1] : vector<32x16xf32> to vector<32xf32>
    %111 = vector.shape_cast %110 : vector<32xf32> to vector<32x1xf32>
    %112 = arith.addf %103, %108 : vector<32x1xf32>
    %113 = arith.addf %106, %111 : vector<32x1xf32>
    %cst_50 = arith.constant 3.125000e-02 : f32
    %114 = vector.broadcast %cst_50 : f32 to vector<32x1xf32>
    %115 = arith.mulf %112, %114 : vector<32x1xf32>
    %cst_51 = arith.constant 3.125000e-02 : f32
    %116 = vector.broadcast %cst_51 : f32 to vector<32x1xf32>
    %117 = arith.mulf %113, %116 : vector<32x1xf32>
    %118 = arith.mulf %115, %115 : vector<32x1xf32>
    %119 = arith.subf %117, %118 : vector<32x1xf32>
    %cst_52 = arith.constant 9.99999974E-6 : f32
    %120 = vector.broadcast %cst_52 : f32 to vector<32x1xf32>
    %121 = arith.addf %119, %120 : vector<32x1xf32>
    %122 = math.rsqrt %121 : vector<32x1xf32>
    %123 = arith.mulf %100, %122 : vector<32x1xf32>
    %124 = arith.mulf %115, %123 : vector<32x1xf32>
    %125 = arith.subf %101, %124 : vector<32x1xf32>
    %126 = vector.broadcast %123 : vector<32x1xf32> to vector<32x16xf32>
    %127 = arith.mulf %98, %126 : vector<32x16xf32>
    %128 = vector.broadcast %125 : vector<32x1xf32> to vector<32x16xf32>
    %129 = arith.addf %127, %128 : vector<32x16xf32>
    %130 = arith.addf %129, %4 : vector<32x16xf32>
    %cst_53 = arith.constant 0.000000e+00 : f32
    %131 = vector.broadcast %cst_53 : f32 to vector<32x16xf32>
    %132 = arith.maximumf %130, %131 : vector<32x16xf32>
    %c0_54 = arith.constant 0 : index
    %c0_55 = arith.constant 0 : index
    %c0_56 = arith.constant 0 : index
    %133 = vector.load %arg10[%c0_54, %c0_55, %c0_56] : memref<2x32x16xf32, #tpu.memory_space<vmem>>, vector<1x32x16xf32>
    %134 = vector.shape_cast %133 : vector<1x32x16xf32> to vector<32x16xf32>
    %135 = vector.shape_cast %132 : vector<32x16xf32> to vector<1x32x16xf32>
    tpu.vector_store %arg10[%c0_54, %c0_55, %c0_56], %135 {strides = array<i32>} : memref<2x32x16xf32, #tpu.memory_space<vmem>>, vector<1x32x16xf32>,
    %136 = vector.broadcast %123 : vector<32x1xf32> to vector<32x16xf32>
    %137 = arith.mulf %99, %136 : vector<32x16xf32>
    %138 = vector.broadcast %125 : vector<32x1xf32> to vector<32x16xf32>
    %139 = arith.addf %137, %138 : vector<32x16xf32>
    %140 = arith.addf %139, %6 : vector<32x16xf32>
    %cst_57 = arith.constant 0.000000e+00 : f32
    %141 = vector.broadcast %cst_57 : f32 to vector<32x16xf32>
    %142 = arith.maximumf %140, %141 : vector<32x16xf32>
    %c1_58 = arith.constant 1 : index
    %c0_59 = arith.constant 0 : index
    %c0_60 = arith.constant 0 : index
    %143 = vector.load %arg10[%c1_58, %c0_59, %c0_60] : memref<2x32x16xf32, #tpu.memory_space<vmem>>, vector<1x32x16xf32>
    %144 = vector.shape_cast %143 : vector<1x32x16xf32> to vector<32x16xf32>
    %145 = vector.shape_cast %142 : vector<32x16xf32> to vector<1x32x16xf32>
    tpu.vector_store %arg10[%c1_58, %c0_59, %c0_60], %145 {strides = array<i32>} : memref<2x32x16xf32, #tpu.memory_space<vmem>>, vector<1x32x16xf32>,
    return
  }
}

</mosaic_0001>

<llo_original>
// kernel: tpu_custom_call.1
$region0: #{tpu_custom_call.1}
  #allocation0 [shape = 'u32[]', space=smem, size = 0x4, offset = 0x4, fixed_abs, tag = 'smem constant byte address 0x4 - core index']
  #allocation1 [shape = 'u32[144,128]{1,0:T(1,128)}', space=vmem, size = 0x12000, scoped, tag = 'internal scratch']
  %s0 = inlined_call_operand.vmem [shape: f32[2,32,16], index: 0, kind: input, shape index: {}]
  %s1 = inlined_call_operand.vmem [shape: f32[8,32], index: 1, kind: input, shape index: {}]
  %s2 = inlined_call_operand.vmem [shape: f32[8,24], index: 2, kind: input, shape index: {}]
  %s3 = inlined_call_operand.vmem [shape: f32[32,8], index: 3, kind: input, shape index: {}]
  %s4 = inlined_call_operand.vmem [shape: f32[8,1], index: 4, kind: input, shape index: {}]
  %s5 = inlined_call_operand.vmem [shape: f32[8,1], index: 5, kind: input, shape index: {}]
  %s6 = inlined_call_operand.vmem [shape: f32[8,1], index: 6, kind: input, shape index: {}]
  %s7 = inlined_call_operand.vmem [shape: f32[8,1], index: 7, kind: input, shape index: {}]
  %s8 = inlined_call_operand.vmem [shape: f32[32,1], index: 8, kind: input, shape index: {}]
  %s9 = inlined_call_operand.vmem [shape: f32[32,1], index: 9, kind: input, shape index: {}]
  %s10 = inlined_call_operand.vmem [shape: f32[2,32,16], index: 10, kind: output, shape index: {}]
  %s11 = sld [smem:[#allocation0]]
  $region50: #{tpu_custom_call.1} parent=0
    _
  %s13 = ssub.s32 1, %s11
  %s14 = scalar_select 0, %s13, %s11
  // Predicated region
  $region2: #{tpu_custom_call.1} parent=0 // pred_check
    _
  $region3: #{tpu_custom_call.1} parent=0 // pred_check_branch
    %16 = sbr.rel (0) target = $region5
  $region4: #{tpu_custom_call.1} parent=0 // pred_region
    _
  $region5: #{tpu_custom_call.1} parent=0 // pred_fallthru
    _
  // Predicated region
  $region6: #{tpu_custom_call.1} parent=0 // pred_check
    _
  $region7: #{tpu_custom_call.1} parent=0 // pred_check_branch
    %18 = sbr.rel (0) target = $region9
  $region8: #{tpu_custom_call.1} parent=0 // pred_region
    _
  $region9: #{tpu_custom_call.1} parent=0 // pred_fallthru
    _
  // Predicated region
  $region10: #{tpu_custom_call.1} parent=0 // pred_check
    _
  $region11: #{tpu_custom_call.1} parent=0 // pred_check_branch
    %20 = sbr.rel (0) target = $region13
  $region12: #{tpu_custom_call.1} parent=0 // pred_region
    _
  $region13: #{tpu_custom_call.1} parent=0 // pred_fallthru
    _
  // Predicated region
  $region14: #{tpu_custom_call.1} parent=0 // pred_check
    _
  $region15: #{tpu_custom_call.1} parent=0 // pred_check_branch
    %22 = sbr.rel (0) target = $region17
  $region16: #{tpu_custom_call.1} parent=0 // pred_region
    _
  $region17: #{tpu_custom_call.1} parent=0 // pred_fallthru
    _
  // Predicated region
  $region18: #{tpu_custom_call.1} parent=0 // pred_check
    _
  $region19: #{tpu_custom_call.1} parent=0 // pred_check_branch
    %24 = sbr.rel (0) target = $region21
  $region20: #{tpu_custom_call.1} parent=0 // pred_region
    _
  $region21: #{tpu_custom_call.1} parent=0 // pred_fallthru
    _
  // Predicated region
  $region22: #{tpu_custom_call.1} parent=0 // pred_check
    _
  $region23: #{tpu_custom_call.1} parent=0 // pred_check_branch
    %26 = sbr.rel (0) target = $region25
  $region24: #{tpu_custom_call.1} parent=0 // pred_region
    _
  $region25: #{tpu_custom_call.1} parent=0 // pred_fallthru
    _
  // Predicated region
  $region26: #{tpu_custom_call.1} parent=0 // pred_check
    _
  $region27: #{tpu_custom_call.1} parent=0 // pred_check_branch
    %28 = sbr.rel (0) target = $region29
  $region28: #{tpu_custom_call.1} parent=0 // pred_region
    _
  $region29: #{tpu_custom_call.1} parent=0 // pred_fallthru
    _
  // Predicated region
  $region30: #{tpu_custom_call.1} parent=0 // pred_check
    _
  $region31: #{tpu_custom_call.1} parent=0 // pred_check_branch
    %30 = sbr.rel (0) target = $region33
  $region32: #{tpu_custom_call.1} parent=0 // pred_region
    _
  $region33: #{tpu_custom_call.1} parent=0 // pred_fallthru
    _
  // Predicated region
  $region34: #{tpu_custom_call.1} parent=0 // pred_check
    _
  $region35: #{tpu_custom_call.1} parent=0 // pred_check_branch
    %32 = sbr.rel (0) target = $region37
  $region36: #{tpu_custom_call.1} parent=0 // pred_region
    _
  $region37: #{tpu_custom_call.1} parent=0 // pred_fallthru
    _
  // Predicated region
  $region38: #{tpu_custom_call.1} parent=0 // pred_check
    _
  $region39: #{tpu_custom_call.1} parent=0 // pred_check_branch
    %34 = sbr.rel (0) target = $region41
  $region40: #{tpu_custom_call.1} parent=0 // pred_region
    _
  $region41: #{tpu_custom_call.1} parent=0 // pred_fallthru
    _
  %v35 = vld [vmem:[%s1] sm:$0xff]
  %v36 = vld [vmem:[%s2] sm:$0xff]
  %v37 = vld [vmem:[%s3] sm:$0xff]
  %v38 = vld [vmem:[%s3 + $0x8] sm:$0xff]
  %v39 = vld [vmem:[%s3 + $0x10] sm:$0xff]
  %v40 = vld [vmem:[%s3 + $0x18] sm:$0xff]
  %v41 = vld [vmem:[%s0] sm:$0xff]
  %v42 = vld [vmem:[%s0 + $0x8] sm:$0xff]
  %v43 = vld [vmem:[%s0 + $0x10] sm:$0xff]
  %v44 = vld [vmem:[%s0 + $0x18] sm:$0xff]
  %s45 = scalar_lea.vmem %s0, 32
  %v46 = vld [vmem:[%s45] sm:$0xff]
  %v47 = vld [vmem:[%s45 + $0x8] sm:$0xff]
  %v48 = vld [vmem:[%s45 + $0x10] sm:$0xff]
  %v49 = vld [vmem:[%s45 + $0x18] sm:$0xff]
  %vm50 = vcmask 261120
  %v52 = vsel %vm50, %v35, 0
  %54 = vmatprep.subr.mxu0 0.0
  %55 = vmatpush1.msra.mxu0 %v41
  %56 = vmatprep.subr.mxu0 0.0
  %57 = vmatpush1.msra.mxu0 %v42
  %58 = vmatprep.subr.mxu0 0.0
  %59 = vmatpush1.msra.mxu0 %v43
  %60 = vmatprep.subr.mxu0 0.0
  %61 = vmatpush1.msra.mxu0 %v44
  %62 = vmatprep.subr.mxu0 0.0
  %63 = vmatpush1.msra.mxu0 0.0
  %64 = vmatprep.subr.mxu0 0.0
  %65 = vmatpush1.msra.mxu0 0.0
  %66 = vmatprep.subr.mxu0 0.0
  %67 = vmatpush1.msra.mxu0 0.0
  %68 = vmatprep.subr.mxu0 0.0
  %69 = vmatpush1.msra.mxu0 0.0
  %70 = vmatprep.subr.mxu0 0.0
  %71 = vmatpush1.msra.mxu0 0.0
  %72 = vmatprep.subr.mxu0 0.0
  %73 = vmatpush1.msra.mxu0 0.0
  %74 = vmatprep.subr.mxu0 0.0
  %75 = vmatpush1.msra.mxu0 0.0
  %76 = vmatprep.subr.mxu0 0.0
  %77 = vmatpush1.msra.mxu0 0.0
  %78 = vmatprep.subr.mxu0 0.0
  %79 = vmatpush1.msra.mxu0 0.0
  %80 = vmatprep.subr.mxu0 0.0
  %81 = vmatpush1.msra.mxu0 0.0
  %82 = vmatprep.subr.mxu0 0.0
  %83 = vmatpush1.msra.mxu0 0.0
  %84 = vmatprep.subr.mxu0 0.0
  %85 = vmatpush1.msra.mxu0 0.0
  %86 = vmatprep.subr.mxu0 0.0
  %87 = vmatpush1.msra.mxu0 0.0
  %88 = vmatprep.subr.mxu0 0.0
  %89 = vmatpush1.msra.mxu0 0.0
  %90 = vmatprep.subr.mxu0 0.0
  %91 = vmatpush1.msra.mxu0 0.0
  %92 = vmatprep.subr.mxu0 0.0
  %93 = vmatpush1.msra.mxu0 0.0
  %94 = vmatprep.subr.mxu0 0.0
  %95 = vmatpush1.msra.mxu0 0.0
  %96 = vmatprep.subr.mxu0 0.0
  %97 = vmatpush1.msra.mxu0 0.0
  %98 = vmatprep.subr.mxu0 0.0
  %99 = vmatpush1.msra.mxu0 0.0
  %100 = vmatprep.subr.mxu0 0.0
  %101 = vmatpush1.msra.mxu0 0.0
  %102 = vmatprep.subr.mxu0 0.0
  %103 = vmatpush1.msra.mxu0 0.0
  %104 = vmatprep.subr.mxu0 0.0
  %105 = vmatpush1.msra.mxu0 0.0
  %106 = vmatprep.subr.mxu0 0.0
  %107 = vmatpush1.msra.mxu0 0.0
  %108 = vmatprep.subr.mxu0 0.0
  %109 = vmatpush1.msra.mxu0 0.0
  %110 = vmatprep.subr.mxu0 0.0
  %111 = vmatpush1.msra.mxu0 0.0
  %112 = vmatprep.subr.mxu0 0.0
  %113 = vmatpush1.msra.mxu0 0.0
  %114 = vmatprep.subr.mxu0 0.0
  %115 = vmatpush1.msra.mxu0 0.0
  %116 = vmatprep.subr.mxu0 0.0
  %117 = vmatpush1.msra.mxu0 0.0
  %118 = vmatprep.mubr.f32.mxu0 0.0
  %119 = vmatmul.mubr.f32.gmra.mrb[0].mxu0 %v52
  %v120 = vpop.f32.mrb[0].mxu0
  %v121 = vadd.f32 0.0, %v120
  %v122 = vpop.f32.mrb[0].mxu0
  %123 = vdwg.mxu0
  %124 = vmatprep.subr.mxu0 0.0
  %125 = vmatpush1.msra.mxu0 %v46
  %126 = vmatprep.subr.mxu0 0.0
  %127 = vmatpush1.msra.mxu0 %v47
  %128 = vmatprep.subr.mxu0 0.0
  %129 = vmatpush1.msra.mxu0 %v48
  %130 = vmatprep.subr.mxu0 0.0
  %131 = vmatpush1.msra.mxu0 %v49
  %132 = vmatprep.subr.mxu0 0.0
  %133 = vmatpush1.msra.mxu0 0.0
  %134 = vmatprep.subr.mxu0 0.0
  %135 = vmatpush1.msra.mxu0 0.0
  %136 = vmatprep.subr.mxu0 0.0
  %137 = vmatpush1.msra.mxu0 0.0
  %138 = vmatprep.subr.mxu0 0.0
  %139 = vmatpush1.msra.mxu0 0.0
  %140 = vmatprep.subr.mxu0 0.0
  %141 = vmatpush1.msra.mxu0 0.0
  %142 = vmatprep.subr.mxu0 0.0
  %143 = vmatpush1.msra.mxu0 0.0
  %144 = vmatprep.subr.mxu0 0.0
  %145 = vmatpush1.msra.mxu0 0.0
  %146 = vmatprep.subr.mxu0 0.0
  %147 = vmatpush1.msra.mxu0 0.0
  %148 = vmatprep.subr.mxu0 0.0
  %149 = vmatpush1.msra.mxu0 0.0
  %150 = vmatprep.subr.mxu0 0.0
  %151 = vmatpush1.msra.mxu0 0.0
  %152 = vmatprep.subr.mxu0 0.0
  %153 = vmatpush1.msra.mxu0 0.0
  %154 = vmatprep.subr.mxu0 0.0
  %155 = vmatpush1.msra.mxu0 0.0
  %156 = vmatprep.subr.mxu0 0.0
  %157 = vmatpush1.msra.mxu0 0.0
  %158 = vmatprep.subr.mxu0 0.0
  %159 = vmatpush1.msra.mxu0 0.0
  %160 = vmatprep.subr.mxu0 0.0
  %161 = vmatpush1.msra.mxu0 0.0
  %162 = vmatprep.subr.mxu0 0.0
  %163 = vmatpush1.msra.mxu0 0.0
  %164 = vmatprep.subr.mxu0 0.0
  %165 = vmatpush1.msra.mxu0 0.0
  %166 = vmatprep.subr.mxu0 0.0
  %167 = vmatpush1.msra.mxu0 0.0
  %168 = vmatprep.subr.mxu0 0.0
  %169 = vmatpush1.msra.mxu0 0.0
  %170 = vmatprep.subr.mxu0 0.0
  %171 = vmatpush1.msra.mxu0 0.0
  %172 = vmatprep.subr.mxu0 0.0
  %173 = vmatpush1.msra.mxu0 0.0
  %174 = vmatprep.subr.mxu0 0.0
  %175 = vmatpush1.msra.mxu0 0.0
  %176 = vmatprep.subr.mxu0 0.0
  %177 = vmatpush1.msra.mxu0 0.0
  %178 = vmatprep.subr.mxu0 0.0
  %179 = vmatpush1.msra.mxu0 0.0
  %180 = vmatprep.subr.mxu0 0.0
  %181 = vmatpush1.msra.mxu0 0.0
  %182 = vmatprep.subr.mxu0 0.0
  %183 = vmatpush1.msra.mxu0 0.0
  %184 = vmatprep.subr.mxu0 0.0
  %185 = vmatpush1.msra.mxu0 0.0
  %186 = vmatprep.subr.mxu0 0.0
  %187 = vmatpush1.msra.mxu0 0.0
  %188 = vmatprep.mubr.f32.mxu0 0.0
  %189 = vmatmul.mubr.f32.gmra.mrb[0].mxu0 %v52
  %v190 = vpop.f32.mrb[0].mxu0
  %v191 = vadd.f32 0.0, %v190
  %v192 = vpop.f32.mrb[0].mxu0
  %193 = vdwg.mxu0
  %v194 = vld [vmem:[%s4] sm:$0xff]
  %v195 = vld [vmem:[%s5] sm:$0xff]
  %vm196 = vcmask 130048
  %v197 = vsel %vm196, %v121, 0.0
  %198 = vadd.xlane.f32.xlu0 %v197
  %v199 = vpop.xlane.xlu0 %198
  %v200 = vmul.f32 %v121, %v121
  %v201 = vsel %vm196, %v200, 0.0
  %202 = vadd.xlane.f32.xlu0 %v201
  %v203 = vpop.xlane.xlu0 %202
  %v204 = vsel %vm196, %v191, 0.0
  %205 = vadd.xlane.f32.xlu0 %v204
  %v206 = vpop.xlane.xlu0 %205
  %v207 = vmul.f32 %v191, %v191
  %v208 = vsel %vm196, %v207, 0.0
  %209 = vadd.xlane.f32.xlu0 %v208
  %v210 = vpop.xlane.xlu0 %209
  %v211 = vadd.f32 %v199, %v206
  %v212 = vadd.f32 %v203, %v210
  %v213 = vmul.f32 %v211, 0.03125
  %v214 = vmul.f32 %v212, 0.03125
  %v215 = vmul.f32 %v213, %v213
  %v216 = vsub.f32 %v214, %v215
  %v217 = vadd.f32 %v216, 1e-05
  %v218 = vrsqrt.pop %v217
  %v219 = vmul.f32 %v194, %v218
  %v220 = vmul.f32 %v213, %v219
  %v221 = vsub.f32 %v195, %v220
  %223 = vset.pattern.permute.xlu0 0
  %224 = vperm.xlu0 %223, %v219
  %v225 = vpop.permute.xlu0 %224
  %v227 = vmul.f32 %v121, %v225
  %229 = vset.pattern.permute.xlu0 0
  %230 = vperm.xlu0 %229, %v221
  %v231 = vpop.permute.xlu0 %230
  %v233 = vadd.f32 %v227, %v231
  %v234 = vmax.f32 %v233, 0.0
  %v235 = vmul.f32 %v191, %v225
  %v236 = vadd.f32 %v235, %v231
  %v237 = vmax.f32 %v236, 0.0
  %239 = vrot.lane.b32.xlu0 %v234, 1
  %v240 = vpop.permute.xlu0 %239
  %vm242 = vcmask 7168
  %v243 = vsel %vm242, 0.0, %v240
  %244 = vrot.lane.b32.xlu0 %v234, 127
  %v245 = vpop.permute.xlu0 %244
  %vm247 = vcmask 121856
  %v248 = vsel %vm247, %v245, 0.0
  %vm249 = vcmask 195584
  %v251 = vsel %vm249, %v36, 0
  %253 = vmatprep.subr.mxu0 0.0
  %254 = vmatpush1.msra.mxu0 %v243
  %255 = vmatprep.subr.mxu0 0.0
  %256 = vmatpush1.msra.mxu0 %v234
  %257 = vmatprep.subr.mxu0 0.0
  %258 = vmatpush1.msra.mxu0 %v248
  %259 = vmatprep.subr.mxu0 0.0
  %260 = vmatpush1.msra.mxu0 0.0
  %261 = vmatprep.subr.mxu0 0.0
  %262 = vmatpush1.msra.mxu0 0.0
  %263 = vmatprep.subr.mxu0 0.0
  %264 = vmatpush1.msra.mxu0 0.0
  %265 = vmatprep.subr.mxu0 0.0
  %266 = vmatpush1.msra.mxu0 0.0
  %267 = vmatprep.subr.mxu0 0.0
  %268 = vmatpush1.msra.mxu0 0.0
  %269 = vmatprep.subr.mxu0 0.0
  %270 = vmatpush1.msra.mxu0 0.0
  %271 = vmatprep.subr.mxu0 0.0
  %272 = vmatpush1.msra.mxu0 0.0
  %273 = vmatprep.subr.mxu0 0.0
  %274 = vmatpush1.msra.mxu0 0.0
  %275 = vmatprep.subr.mxu0 0.0
  %276 = vmatpush1.msra.mxu0 0.0
  %277 = vmatprep.subr.mxu0 0.0
  %278 = vmatpush1.msra.mxu0 0.0
  %279 = vmatprep.subr.mxu0 0.0
  %280 = vmatpush1.msra.mxu0 0.0
  %281 = vmatprep.subr.mxu0 0.0
  %282 = vmatpush1.msra.mxu0 0.0
  %283 = vmatprep.subr.mxu0 0.0
  %284 = vmatpush1.msra.mxu0 0.0
  %285 = vmatprep.subr.mxu0 0.0
  %286 = vmatpush1.msra.mxu0 0.0
  %287 = vmatprep.subr.mxu0 0.0
  %288 = vmatpush1.msra.mxu0 0.0
  %289 = vmatprep.subr.mxu0 0.0
  %290 = vmatpush1.msra.mxu0 0.0
  %291 = vmatprep.subr.mxu0 0.0
  %292 = vmatpush1.msra.mxu0 0.0
  %293 = vmatprep.subr.mxu0 0.0
  %294 = vmatpush1.msra.mxu0 0.0
  %295 = vmatprep.subr.mxu0 0.0
  %296 = vmatpush1.msra.mxu0 0.0
  %297 = vmatprep.subr.mxu0 0.0
  %298 = vmatpush1.msra.mxu0 0.0
  %299 = vmatprep.subr.mxu0 0.0
  %300 = vmatpush1.msra.mxu0 0.0
  %301 = vmatprep.subr.mxu0 0.0
  %302 = vmatpush1.msra.mxu0 0.0
  %303 = vmatprep.subr.mxu0 0.0
  %304 = vmatpush1.msra.mxu0 0.0
  %305 = vmatprep.subr.mxu0 0.0
  %306 = vmatpush1.msra.mxu0 0.0
  %307 = vmatprep.subr.mxu0 0.0
  %308 = vmatpush1.msra.mxu0 0.0
  %309 = vmatprep.subr.mxu0 0.0
  %310 = vmatpush1.msra.mxu0 0.0
  %311 = vmatprep.subr.mxu0 0.0
  %312 = vmatpush1.msra.mxu0 0.0
  %313 = vmatprep.subr.mxu0 0.0
  %314 = vmatpush1.msra.mxu0 0.0
  %315 = vmatprep.subr.mxu0 0.0
  %316 = vmatpush1.msra.mxu0 0.0
  %317 = vmatprep.mubr.f32.mxu0 0.0
  %318 = vmatmul.mubr.f32.gmra.mrb[0].mxu0 %v251
  %v319 = vpop.f32.mrb[0].mxu0
  %v320 = vadd.f32 0.0, %v319
  %v321 = vpop.f32.mrb[0].mxu0
  %322 = vdwg.mxu0
  %324 = vrot.lane.b32.xlu0 %v237, 1
  %v325 = vpop.permute.xlu0 %324
  %v327 = vsel %vm242, 0.0, %v325
  %328 = vrot.lane.b32.xlu0 %v237, 127
  %v329 = vpop.permute.xlu0 %328
  %v331 = vsel %vm247, %v329, 0.0
  %332 = vmatprep.subr.mxu0 0.0
  %333 = vmatpush1.msra.mxu0 %v327
  %334 = vmatprep.subr.mxu0 0.0
  %335 = vmatpush1.msra.mxu0 %v237
  %336 = vmatprep.subr.mxu0 0.0
  %337 = vmatpush1.msra.mxu0 %v331
  %338 = vmatprep.subr.mxu0 0.0
  %339 = vmatpush1.msra.mxu0 0.0
  %340 = vmatprep.subr.mxu0 0.0
  %341 = vmatpush1.msra.mxu0 0.0
  %342 = vmatprep.subr.mxu0 0.0
  %343 = vmatpush1.msra.mxu0 0.0
  %344 = vmatprep.subr.mxu0 0.0
  %345 = vmatpush1.msra.mxu0 0.0
  %346 = vmatprep.subr.mxu0 0.0
  %347 = vmatpush1.msra.mxu0 0.0
  %348 = vmatprep.subr.mxu0 0.0
  %349 = vmatpush1.msra.mxu0 0.0
  %350 = vmatprep.subr.mxu0 0.0
  %351 = vmatpush1.msra.mxu0 0.0
  %352 = vmatprep.subr.mxu0 0.0
  %353 = vmatpush1.msra.mxu0 0.0
  %354 = vmatprep.subr.mxu0 0.0
  %355 = vmatpush1.msra.mxu0 0.0
  %356 = vmatprep.subr.mxu0 0.0
  %357 = vmatpush1.msra.mxu0 0.0
  %358 = vmatprep.subr.mxu0 0.0
  %359 = vmatpush1.msra.mxu0 0.0
  %360 = vmatprep.subr.mxu0 0.0
  %361 = vmatpush1.msra.mxu0 0.0
  %362 = vmatprep.subr.mxu0 0.0
  %363 = vmatpush1.msra.mxu0 0.0
  %364 = vmatprep.subr.mxu0 0.0
  %365 = vmatpush1.msra.mxu0 0.0
  %366 = vmatprep.subr.mxu0 0.0
  %367 = vmatpush1.msra.mxu0 0.0
  %368 = vmatprep.subr.mxu0 0.0
  %369 = vmatpush1.msra.mxu0 0.0
  %370 = vmatprep.subr.mxu0 0.0
  %371 = vmatpush1.msra.mxu0 0.0
  %372 = vmatprep.subr.mxu0 0.0
  %373 = vmatpush1.msra.mxu0 0.0
  %374 = vmatprep.subr.mxu0 0.0
  %375 = vmatpush1.msra.mxu0 0.0
  %376 = vmatprep.subr.mxu0 0.0
  %377 = vmatpush1.msra.mxu0 0.0
  %378 = vmatprep.subr.mxu0 0.0
  %379 = vmatpush1.msra.mxu0 0.0
  %380 = vmatprep.subr.mxu0 0.0
  %381 = vmatpush1.msra.mxu0 0.0
  %382 = vmatprep.subr.mxu0 0.0
  %383 = vmatpush1.msra.mxu0 0.0
  %384 = vmatprep.subr.mxu0 0.0
  %385 = vmatpush1.msra.mxu0 0.0
  %386 = vmatprep.subr.mxu0 0.0
  %387 = vmatpush1.msra.mxu0 0.0
  %388 = vmatprep.subr.mxu0 0.0
  %389 = vmatpush1.msra.mxu0 0.0
  %390 = vmatprep.subr.mxu0 0.0
  %391 = vmatpush1.msra.mxu0 0.0
  %392 = vmatprep.subr.mxu0 0.0
  %393 = vmatpush1.msra.mxu0 0.0
  %394 = vmatprep.subr.mxu0 0.0
  %395 = vmatpush1.msra.mxu0 0.0
  %396 = vmatprep.mubr.f32.mxu0 0.0
  %397 = vmatmul.mubr.f32.gmra.mrb[0].mxu0 %v251
  %v398 = vpop.f32.mrb[0].mxu0
  %v399 = vadd.f32 0.0, %v398
  %v400 = vpop.f32.mrb[0].mxu0
  %401 = vdwg.mxu0
  %v402 = vld [vmem:[%s6] sm:$0xff]
  %v403 = vld [vmem:[%s7] sm:$0xff]
  %v404 = vsel %vm196, %v320, 0.0
  %405 = vadd.xlane.f32.xlu0 %v404
  %v406 = vpop.xlane.xlu0 %405
  %v407 = vmul.f32 %v320, %v320
  %v408 = vsel %vm196, %v407, 0.0
  %409 = vadd.xlane.f32.xlu0 %v408
  %v410 = vpop.xlane.xlu0 %409
  %v411 = vsel %vm196, %v399, 0.0
  %412 = vadd.xlane.f32.xlu0 %v411
  %v413 = vpop.xlane.xlu0 %412
  %v414 = vmul.f32 %v399, %v399
  %v415 = vsel %vm196, %v414, 0.0
  %416 = vadd.xlane.f32.xlu0 %v415
  %v417 = vpop.xlane.xlu0 %416
  %v418 = vadd.f32 %v406, %v413
  %v419 = vadd.f32 %v410, %v417
  %v420 = vmul.f32 %v418, 0.03125
  %v421 = vmul.f32 %v419, 0.03125
  %v422 = vmul.f32 %v420, %v420
  %v423 = vsub.f32 %v421, %v422
  %v424 = vadd.f32 %v423, 1e-05
  %v425 = vrsqrt.pop %v424
  %v426 = vmul.f32 %v402, %v425
  %v427 = vmul.f32 %v420, %v426
  %v428 = vsub.f32 %v403, %v427
  %430 = vset.pattern.permute.xlu0 0
  %431 = vperm.xlu0 %430, %v426
  %v432 = vpop.permute.xlu0 %431
  %v434 = vmul.f32 %v320, %v432
  %436 = vset.pattern.permute.xlu0 0
  %437 = vperm.xlu0 %436, %v428
  %v438 = vpop.permute.xlu0 %437
  %v440 = vadd.f32 %v434, %v438
  %v441 = vmax.f32 %v440, 0.0
  %v442 = vmul.f32 %v399, %v432
  %v443 = vadd.f32 %v442, %v438
  %v444 = vmax.f32 %v443, 0.0
  %vm445 = vcmask 64512
  %v447 = vsel %vm445, %v37, 0
  %v450 = vsel %vm445, %v38, 0
  %v453 = vsel %vm445, %v39, 0
  %v456 = vsel %vm445, %v40, 0
  %458 = vmatprep.subr.mxu0 0.0
  %459 = vmatpush1.msra.mxu0 %v441
  %460 = vmatprep.subr.mxu0 0.0
  %461 = vmatpush1.msra.mxu0 0.0
  %462 = vmatprep.subr.mxu0 0.0
  %463 = vmatpush1.msra.mxu0 0.0
  %464 = vmatprep.subr.mxu0 0.0
  %465 = vmatpush1.msra.mxu0 0.0
  %466 = vmatprep.subr.mxu0 0.0
  %467 = vmatpush1.msra.mxu0 0.0
  %468 = vmatprep.subr.mxu0 0.0
  %469 = vmatpush1.msra.mxu0 0.0
  %470 = vmatprep.subr.mxu0 0.0
  %471 = vmatpush1.msra.mxu0 0.0
  %472 = vmatprep.subr.mxu0 0.0
  %473 = vmatpush1.msra.mxu0 0.0
  %474 = vmatprep.subr.mxu0 0.0
  %475 = vmatpush1.msra.mxu0 0.0
  %476 = vmatprep.subr.mxu0 0.0
  %477 = vmatpush1.msra.mxu0 0.0
  %478 = vmatprep.subr.mxu0 0.0
  %479 = vmatpush1.msra.mxu0 0.0
  %480 = vmatprep.subr.mxu0 0.0
  %481 = vmatpush1.msra.mxu0 0.0
  %482 = vmatprep.subr.mxu0 0.0
  %483 = vmatpush1.msra.mxu0 0.0
  %484 = vmatprep.subr.mxu0 0.0
  %485 = vmatpush1.msra.mxu0 0.0
  %486 = vmatprep.subr.mxu0 0.0
  %487 = vmatpush1.msra.mxu0 0.0
  %488 = vmatprep.subr.mxu0 0.0
  %489 = vmatpush1.msra.mxu0 0.0
  %490 = vmatprep.subr.mxu0 0.0
  %491 = vmatpush1.msra.mxu0 0.0
  %492 = vmatprep.subr.mxu0 0.0
  %493 = vmatpush1.msra.mxu0 0.0
  %494 = vmatprep.subr.mxu0 0.0
  %495 = vmatpush1.msra.mxu0 0.0
  %496 = vmatprep.subr.mxu0 0.0
  %497 = vmatpush1.msra.mxu0 0.0
  %498 = vmatprep.subr.mxu0 0.0
  %499 = vmatpush1.msra.mxu0 0.0
  %500 = vmatprep.subr.mxu0 0.0
  %501 = vmatpush1.msra.mxu0 0.0
  %502 = vmatprep.subr.mxu0 0.0
  %503 = vmatpush1.msra.mxu0 0.0
  %504 = vmatprep.subr.mxu0 0.0
  %505 = vmatpush1.msra.mxu0 0.0
  %506 = vmatprep.subr.mxu0 0.0
  %507 = vmatpush1.msra.mxu0 0.0
  %508 = vmatprep.subr.mxu0 0.0
  %509 = vmatpush1.msra.mxu0 0.0
  %510 = vmatprep.subr.mxu0 0.0
  %511 = vmatpush1.msra.mxu0 0.0
  %512 = vmatprep.subr.mxu0 0.0
  %513 = vmatpush1.msra.mxu0 0.0
  %514 = vmatprep.subr.mxu0 0.0
  %515 = vmatpush1.msra.mxu0 0.0
  %516 = vmatprep.subr.mxu0 0.0
  %517 = vmatpush1.msra.mxu0 0.0
  %518 = vmatprep.subr.mxu0 0.0
  %519 = vmatpush1.msra.mxu0 0.0
  %520 = vmatprep.subr.mxu0 0.0
  %521 = vmatpush1.msra.mxu0 0.0
  %522 = vmatprep.mubr.f32.mxu0 0.0
  %523 = vmatmul.mubr.f32.gmra.mrb[0].mxu0 %v447
  %v524 = vpop.f32.mrb[0].mxu0
  %v525 = vadd.f32 0.0, %v524
  %v526 = vpop.f32.mrb[0].mxu0
  %527 = vmatprep.mubr.f32.mxu0 0.0
  %528 = vmatmul.mubr.f32.gmra.mrb[0].mxu0 %v450
  %v529 = vpop.f32.mrb[0].mxu0
  %v530 = vadd.f32 0.0, %v529
  %v531 = vpop.f32.mrb[0].mxu0
  %532 = vmatprep.mubr.f32.mxu0 0.0
  %533 = vmatmul.mubr.f32.gmra.mrb[0].mxu0 %v453
  %v534 = vpop.f32.mrb[0].mxu0
  %v535 = vadd.f32 0.0, %v534
  %v536 = vpop.f32.mrb[0].mxu0
  %537 = vmatprep.mubr.f32.mxu0 0.0
  %538 = vmatmul.mubr.f32.gmra.mrb[0].mxu0 %v456
  %v539 = vpop.f32.mrb[0].mxu0
  %v540 = vadd.f32 0.0, %v539
  %v541 = vpop.f32.mrb[0].mxu0
  %542 = vdwg.mxu0
  %543 = vmatprep.subr.mxu0 0.0
  %544 = vmatpush1.msra.mxu0 %v444
  %545 = vmatprep.subr.mxu0 0.0
  %546 = vmatpush1.msra.mxu0 0.0
  %547 = vmatprep.subr.mxu0 0.0
  %548 = vmatpush1.msra.mxu0 0.0
  %549 = vmatprep.subr.mxu0 0.0
  %550 = vmatpush1.msra.mxu0 0.0
  %551 = vmatprep.subr.mxu0 0.0
  %552 = vmatpush1.msra.mxu0 0.0
  %553 = vmatprep.subr.mxu0 0.0
  %554 = vmatpush1.msra.mxu0 0.0
  %555 = vmatprep.subr.mxu0 0.0
  %556 = vmatpush1.msra.mxu0 0.0
  %557 = vmatprep.subr.mxu0 0.0
  %558 = vmatpush1.msra.mxu0 0.0
  %559 = vmatprep.subr.mxu0 0.0
  %560 = vmatpush1.msra.mxu0 0.0
  %561 = vmatprep.subr.mxu0 0.0
  %562 = vmatpush1.msra.mxu0 0.0
  %563 = vmatprep.subr.mxu0 0.0
  %564 = vmatpush1.msra.mxu0 0.0
  %565 = vmatprep.subr.mxu0 0.0
  %566 = vmatpush1.msra.mxu0 0.0
  %567 = vmatprep.subr.mxu0 0.0
  %568 = vmatpush1.msra.mxu0 0.0
  %569 = vmatprep.subr.mxu0 0.0
  %570 = vmatpush1.msra.mxu0 0.0
  %571 = vmatprep.subr.mxu0 0.0
  %572 = vmatpush1.msra.mxu0 0.0
  %573 = vmatprep.subr.mxu0 0.0
  %574 = vmatpush1.msra.mxu0 0.0
  %575 = vmatprep.subr.mxu0 0.0
  %576 = vmatpush1.msra.mxu0 0.0
  %577 = vmatprep.subr.mxu0 0.0
  %578 = vmatpush1.msra.mxu0 0.0
  %579 = vmatprep.subr.mxu0 0.0
  %580 = vmatpush1.msra.mxu0 0.0
  %581 = vmatprep.subr.mxu0 0.0
  %582 = vmatpush1.msra.mxu0 0.0
  %583 = vmatprep.subr.mxu0 0.0
  %584 = vmatpush1.msra.mxu0 0.0
  %585 = vmatprep.subr.mxu0 0.0
  %586 = vmatpush1.msra.mxu0 0.0
  %587 = vmatprep.subr.mxu0 0.0
  %588 = vmatpush1.msra.mxu0 0.0
  %589 = vmatprep.subr.mxu0 0.0
  %590 = vmatpush1.msra.mxu0 0.0
  %591 = vmatprep.subr.mxu0 0.0
  %592 = vmatpush1.msra.mxu0 0.0
  %593 = vmatprep.subr.mxu0 0.0
  %594 = vmatpush1.msra.mxu0 0.0
  %595 = vmatprep.subr.mxu0 0.0
  %596 = vmatpush1.msra.mxu0 0.0
  %597 = vmatprep.subr.mxu0 0.0
  %598 = vmatpush1.msra.mxu0 0.0
  %599 = vmatprep.subr.mxu0 0.0
  %600 = vmatpush1.msra.mxu0 0.0
  %601 = vmatprep.subr.mxu0 0.0
  %602 = vmatpush1.msra.mxu0 0.0
  %603 = vmatprep.subr.mxu0 0.0
  %604 = vmatpush1.msra.mxu0 0.0
  %605 = vmatprep.subr.mxu0 0.0
  %606 = vmatpush1.msra.mxu0 0.0
  %607 = vmatprep.mubr.f32.mxu0 0.0
  %608 = vmatmul.mubr.f32.gmra.mrb[0].mxu0 %v447
  %v609 = vpop.f32.mrb[0].mxu0
  %v610 = vadd.f32 0.0, %v609
  %v611 = vpop.f32.mrb[0].mxu0
  %612 = vmatprep.mubr.f32.mxu0 0.0
  %613 = vmatmul.mubr.f32.gmra.mrb[0].mxu0 %v450
  %v614 = vpop.f32.mrb[0].mxu0
  %v615 = vadd.f32 0.0, %v614
  %v616 = vpop.f32.mrb[0].mxu0
  %617 = vmatprep.mubr.f32.mxu0 0.0
  %618 = vmatmul.mubr.f32.gmra.mrb[0].mxu0 %v453
  %v619 = vpop.f32.mrb[0].mxu0
  %v620 = vadd.f32 0.0, %v619
  %v621 = vpop.f32.mrb[0].mxu0
  %622 = vmatprep.mubr.f32.mxu0 0.0
  %623 = vmatmul.mubr.f32.gmra.mrb[0].mxu0 %v456
  %v624 = vpop.f32.mrb[0].mxu0
  %v625 = vadd.f32 0.0, %v624
  %v626 = vpop.f32.mrb[0].mxu0
  %627 = vdwg.mxu0
  %v628 = vld [vmem:[%s8] sm:$0xff]
  %v629 = vld [vmem:[%s8 + $0x8] sm:$0xff]
  %v630 = vld [vmem:[%s8 + $0x10] sm:$0xff]
  %v631 = vld [vmem:[%s8 + $0x18] sm:$0xff]
  %v632 = vld [vmem:[%s9] sm:$0xff]
  %v633 = vld [vmem:[%s9 + $0x8] sm:$0xff]
  %v634 = vld [vmem:[%s9 + $0x10] sm:$0xff]
  %v635 = vld [vmem:[%s9 + $0x18] sm:$0xff]
  %v636 = vsel %vm196, %v525, 0.0
  %637 = vadd.xlane.f32.xlu0 %v636
  %v638 = vpop.xlane.xlu0 %637
  %v639 = vsel %vm196, %v530, 0.0
  %640 = vadd.xlane.f32.xlu0 %v639
  %v641 = vpop.xlane.xlu0 %640
  %v642 = vsel %vm196, %v535, 0.0
  %643 = vadd.xlane.f32.xlu0 %v642
  %v644 = vpop.xlane.xlu0 %643
  %v645 = vsel %vm196, %v540, 0.0
  %646 = vadd.xlane.f32.xlu0 %v645
  %v647 = vpop.xlane.xlu0 %646
  %v648 = vmul.f32 %v525, %v525
  %v649 = vmul.f32 %v530, %v530
  %v650 = vmul.f32 %v535, %v535
  %v651 = vmul.f32 %v540, %v540
  %v652 = vsel %vm196, %v648, 0.0
  %653 = vadd.xlane.f32.xlu0 %v652
  %v654 = vpop.xlane.xlu0 %653
  %v655 = vsel %vm196, %v649, 0.0
  %656 = vadd.xlane.f32.xlu0 %v655
  %v657 = vpop.xlane.xlu0 %656
  %v658 = vsel %vm196, %v650, 0.0
  %659 = vadd.xlane.f32.xlu0 %v658
  %v660 = vpop.xlane.xlu0 %659
  %v661 = vsel %vm196, %v651, 0.0
  %662 = vadd.xlane.f32.xlu0 %v661
  %v663 = vpop.xlane.xlu0 %662
  %v664 = vsel %vm196, %v610, 0.0
  %665 = vadd.xlane.f32.xlu0 %v664
  %v666 = vpop.xlane.xlu0 %665
  %v667 = vsel %vm196, %v615, 0.0
  %668 = vadd.xlane.f32.xlu0 %v667
  %v669 = vpop.xlane.xlu0 %668
  %v670 = vsel %vm196, %v620, 0.0
  %671 = vadd.xlane.f32.xlu0 %v670
  %v672 = vpop.xlane.xlu0 %671
  %v673 = vsel %vm196, %v625, 0.0
  %674 = vadd.xlane.f32.xlu0 %v673
  %v675 = vpop.xlane.xlu0 %674
  %v676 = vmul.f32 %v610, %v610
  %v677 = vmul.f32 %v615, %v615
  %v678 = vmul.f32 %v620, %v620
  %v679 = vmul.f32 %v625, %v625
  %v680 = vsel %vm196, %v676, 0.0
  %681 = vadd.xlane.f32.xlu0 %v680
  %v682 = vpop.xlane.xlu0 %681
  %v683 = vsel %vm196, %v677, 0.0
  %684 = vadd.xlane.f32.xlu0 %v683
  %v685 = vpop.xlane.xlu0 %684
  %v686 = vsel %vm196, %v678, 0.0
  %687 = vadd.xlane.f32.xlu0 %v686
  %v688 = vpop.xlane.xlu0 %687
  %v689 = vsel %vm196, %v679, 0.0
  %690 = vadd.xlane.f32.xlu0 %v689
  %v691 = vpop.xlane.xlu0 %690
  %v692 = vadd.f32 %v638, %v666
  %v693 = vadd.f32 %v641, %v669
  %v694 = vadd.f32 %v644, %v672
  %v695 = vadd.f32 %v647, %v675
  %v696 = vadd.f32 %v654, %v682
  %v697 = vadd.f32 %v657, %v685
  %v698 = vadd.f32 %v660, %v688
  %v699 = vadd.f32 %v663, %v691
  %v700 = vmul.f32 %v692, 0.03125
  %v701 = vmul.f32 %v693, 0.03125
  %v702 = vmul.f32 %v694, 0.03125
  %v703 = vmul.f32 %v695, 0.03125
  %v704 = vmul.f32 %v696, 0.03125
  %v705 = vmul.f32 %v697, 0.03125
  %v706 = vmul.f32 %v698, 0.03125
  %v707 = vmul.f32 %v699, 0.03125
  %v708 = vmul.f32 %v700, %v700
  %v709 = vmul.f32 %v701, %v701
  %v710 = vmul.f32 %v702, %v702
  %v711 = vmul.f32 %v703, %v703
  %v712 = vsub.f32 %v704, %v708
  %v713 = vsub.f32 %v705, %v709
  %v714 = vsub.f32 %v706, %v710
  %v715 = vsub.f32 %v707, %v711
  %v716 = vadd.f32 %v712, 1e-05
  %v717 = vadd.f32 %v713, 1e-05
  %v718 = vadd.f32 %v714, 1e-05
  %v719 = vadd.f32 %v715, 1e-05
  %v720 = vrsqrt.pop %v716
  %v721 = vrsqrt.pop %v717
  %v722 = vrsqrt.pop %v718
  %v723 = vrsqrt.pop %v719
  %v724 = vmul.f32 %v628, %v720
  %v725 = vmul.f32 %v629, %v721
  %v726 = vmul.f32 %v630, %v722
  %v727 = vmul.f32 %v631, %v723
  %v728 = vmul.f32 %v700, %v724
  %v729 = vmul.f32 %v701, %v725
  %v730 = vmul.f32 %v702, %v726
  %v731 = vmul.f32 %v703, %v727
  %v732 = vsub.f32 %v632, %v728
  %v733 = vsub.f32 %v633, %v729
  %v734 = vsub.f32 %v634, %v730
  %v735 = vsub.f32 %v635, %v731
  %737 = vset.pattern.permute.xlu0 0
  %738 = vperm.xlu0 %737, %v724
  %v739 = vpop.permute.xlu0 %738
  %742 = vset.pattern.permute.xlu0 0
  %743 = vperm.xlu0 %742, %v725
  %v744 = vpop.permute.xlu0 %743
  %747 = vset.pattern.permute.xlu0 0
  %748 = vperm.xlu0 %747, %v726
  %v749 = vpop.permute.xlu0 %748
  %752 = vset.pattern.permute.xlu0 0
  %753 = vperm.xlu0 %752, %v727
  %v754 = vpop.permute.xlu0 %753
  %v756 = vmul.f32 %v525, %v739
  %v757 = vmul.f32 %v530, %v744
  %v758 = vmul.f32 %v535, %v749
  %v759 = vmul.f32 %v540, %v754
  %761 = vset.pattern.permute.xlu0 0
  %762 = vperm.xlu0 %761, %v732
  %v763 = vpop.permute.xlu0 %762
  %766 = vset.pattern.permute.xlu0 0
  %767 = vperm.xlu0 %766, %v733
  %v768 = vpop.permute.xlu0 %767
  %771 = vset.pattern.permute.xlu0 0
  %772 = vperm.xlu0 %771, %v734
  %v773 = vpop.permute.xlu0 %772
  %776 = vset.pattern.permute.xlu0 0
  %777 = vperm.xlu0 %776, %v735
  %v778 = vpop.permute.xlu0 %777
  %v780 = vadd.f32 %v756, %v763
  %v781 = vadd.f32 %v757, %v768
  %v782 = vadd.f32 %v758, %v773
  %v783 = vadd.f32 %v759, %v778
  %v784 = vadd.f32 %v780, %v41
  %v785 = vadd.f32 %v781, %v42
  %v786 = vadd.f32 %v782, %v43
  %v787 = vadd.f32 %v783, %v44
  %v788 = vmax.f32 %v784, 0.0
  %v789 = vmax.f32 %v785, 0.0
  %v790 = vmax.f32 %v786, 0.0
  %v791 = vmax.f32 %v787, 0.0
  %792 = vst.msk [vmem:[%s10] sm:$0xff] %vm196, %v788
  %793 = vst.msk [vmem:[%s10 + $0x8] sm:$0xff] %vm196, %v789
  %794 = vst.msk [vmem:[%s10 + $0x10] sm:$0xff] %vm196, %v790
  %795 = vst.msk [vmem:[%s10 + $0x18] sm:$0xff] %vm196, %v791
  %v796 = vmul.f32 %v610, %v739
  %v797 = vmul.f32 %v615, %v744
  %v798 = vmul.f32 %v620, %v749
  %v799 = vmul.f32 %v625, %v754
  %v800 = vadd.f32 %v796, %v763
  %v801 = vadd.f32 %v797, %v768
  %v802 = vadd.f32 %v798, %v773
  %v803 = vadd.f32 %v799, %v778
  %v804 = vadd.f32 %v800, %v46
  %v805 = vadd.f32 %v801, %v47
  %v806 = vadd.f32 %v802, %v48
  %v807 = vadd.f32 %v803, %v49
  %v808 = vmax.f32 %v804, 0.0
  %v809 = vmax.f32 %v805, 0.0
  %v810 = vmax.f32 %v806, 0.0
  %v811 = vmax.f32 %v807, 0.0
  %s812 = scalar_lea.vmem %s10, 32
  %813 = vst.msk [vmem:[%s812] sm:$0xff] %vm196, %v808
  %814 = vst.msk [vmem:[%s812 + $0x8] sm:$0xff] %vm196, %v809
  %815 = vst.msk [vmem:[%s812 + $0x10] sm:$0xff] %vm196, %v810
  %816 = vst.msk [vmem:[%s812 + $0x18] sm:$0xff] %vm196, %v811
  // Predicated region
  $region42: #{tpu_custom_call.1} parent=0 // pred_check
    _
  $region43: #{tpu_custom_call.1} parent=0 // pred_check_branch
    %818 = sbr.rel (0) target = $region45
  $region44: #{tpu_custom_call.1} parent=0 // pred_region
    _
  $region45: #{tpu_custom_call.1} parent=0 // pred_fallthru
    _
  // Predicated region
  $region46: #{tpu_custom_call.1} parent=0 // pred_check
    _
  $region47: #{tpu_custom_call.1} parent=0 // pred_check_branch
    %820 = sbr.rel (0) target = $region49
  $region48: #{tpu_custom_call.1} parent=0 // pred_region
    _
  $region49: #{tpu_custom_call.1} parent=0 // pred_fallthru
    _

</llo_original>
